<compile_context>
chip_gen: v7x
topology: tpu7x:2x2x1
jax: 0.10.0
libtpu: 0.0.40
codegen_flags: <defaults>
</compile_context>

<pallas_src>
import functools

import jax
import jax.numpy as jnp
import numpy as np
from jax import lax
from jax.experimental import pallas as pl
from jax.experimental.pallas import tpu as pltpu


def _round_up(x, m):
    return (x + m - 1) // m * m


def adaln_zero_kernel(c_ref, w_ref, o_ref, *, adaln_scale):
    # c_ref: (TB, d_c)   batch tile of conditioning vectors
    # w_ref: (C, d_c)    chunk j of the Linear weight, native (out_features, in_features)
    # o_ref: (1, TB, C)  chunk-major output slab
    j = pl.program_id(0)                       # which of the 6 adaLN chunks
    cx = c_ref[...]
    wx = w_ref[...]
    if cx.dtype != wx.dtype:                   # allow e.g. bf16 weight + f32 c
        ct = jnp.promote_types(cx.dtype, wx.dtype)
        cx = cx.astype(ct)
        wx = wx.astype(ct)
    # c @ W_chunk.T : contract on the weight's minor (in_features) dim.
    acc = lax.dot_general(cx, wx,
                          dimension_numbers=(((1,), (1,)), ((), ())),
                          preferred_element_type=jnp.float32)
    mod = jnp.tanh(acc) * adaln_scale          # tanh -> EUP slot
    # Chunks 1,2,4,5 (scale_msa, gate_msa, scale_mlp, gate_mlp) get +1; 0,3 (shifts) don't.
    off = (j % 3 != 0).astype(jnp.float32)
    o_ref[0] = (mod + off).astype(o_ref.dtype)


def adaln_zero_patch(c, weight, *, adaln_scale=1.0, out_dtype=None):
    """c: (B, d_c); weight: PyTorch nn.Linear weight of shape (6*embed_dim, d_c).

    Returns (shift_msa, scale_msa, gate_msa, shift_mlp, scale_mlp, gate_mlp),
    each of shape (B, embed_dim), matching AdaLNZeroPatch.forward.

    Note: adaln_scale must be a static Python float (it is an init-time constant
    in the module). No dtype casts / transposes are done here — pass bf16 arrays
    to halve HBM traffic; accumulation is f32 either way.
    """
    B, d_c = c.shape
    six_c, d_c_w = weight.shape
    assert d_c_w == d_c and six_c % 6 == 0
    C = six_c // 6
    out_dtype = c.dtype if out_dtype is None else out_dtype

    # Batch tiling: pad to a sublane multiple, keep padding small but tiles big.
    B8 = _round_up(B, 8)
    if B8 <= 256:
        TB, Bp = B8, B8
    else:
        TB = next(t for t in range(256, 0, -8) if B8 % t == 0)
        if TB < 64:            # pathological B: bound padding instead of tiny tiles
            TB = 128
        Bp = _round_up(B8, TB)
    cp = jnp.pad(c, ((0, Bp - B), (0, 0))) if Bp != B else c

    # Scoped VMEM sized from the double-buffered tiles, with headroom.
    bytes_c = TB * d_c * jnp.dtype(c.dtype).itemsize
    bytes_w = C * d_c * jnp.dtype(weight.dtype).itemsize
    bytes_o = TB * C * jnp.dtype(out_dtype).itemsize
    vmem_limit = int(min(max(2 * (bytes_c + bytes_w + bytes_o) + (4 << 20),
                             32 << 20), 96 << 20))

    kernel = functools.partial(adaln_zero_kernel, adaln_scale=adaln_scale)

    out = pl.pallas_call(
        kernel,
        out_shape=jax.ShapeDtypeStruct((6, Bp, C), out_dtype),
        grid_spec=pltpu.PrefetchScalarGridSpec(
            num_scalar_prefetch=0,
            # Chunk axis leading: weight chunk j stays resident across all batch tiles,
            # so the full weight is streamed from HBM exactly once.
            grid=(6, Bp // TB),
            in_specs=[
                pl.BlockSpec((TB, d_c), lambda j, i: (i, 0)),   # c batch tile
                pl.BlockSpec((C, d_c), lambda j, i: (j, 0)),    # weight chunk (native layout)
            ],
            out_specs=pl.BlockSpec((1, TB, C), lambda j, i: (j, i, 0)),
        ),
        compiler_params=pltpu.CompilerParams(
            dimension_semantics=("parallel", "parallel"),
            vmem_limit_bytes=vmem_limit),
    )(cp, weight)

    # Chunk-major output: contiguous per-chunk slabs, drop batch padding.
    return tuple(out[k, :B, :] for k in range(6))


def reference(c, weight, adaln_scale):
    """Pure-JAX reference mirroring the PyTorch forward (f32, highest precision)."""
    C = weight.shape[0] // 6
    mod = jnp.tanh(jnp.dot(c.astype(jnp.float32), weight.astype(jnp.float32).T,
                           precision=lax.Precision.HIGHEST)) * adaln_scale
    ch = [mod[:, k * C:(k + 1) * C] for k in range(6)]
    shift_msa, scale_msa, gate_msa, shift_mlp, scale_mlp, gate_mlp = ch
    return (shift_msa, scale_msa + 1.0, gate_msa + 1.0,
            shift_mlp, scale_mlp + 1.0, gate_mlp + 1.0)


if __name__ == "__main__":
    B, embed_dim, d_c = 2, 32, 64
    adaln_scale = 1.0

    k0, k1 = jax.random.split(jax.random.PRNGKey(0), 2)
    c = jax.random.normal(k0, (B, d_c), jnp.float32)
    # PyTorch zero-inits this weight; use small random values so the tanh path
    # is actually exercised numerically.
    weight = 0.02 * jax.random.normal(k1, (6 * embed_dim, d_c), jnp.float32)

    outs = adaln_zero_patch(c, weight, adaln_scale=adaln_scale)
    outs = jax.block_until_ready(outs)

    refs = reference(c, weight, adaln_scale)
    # Default (single-pass bf16) MXU precision vs. f32 reference -> loose tolerances.
    for got, exp in zip(outs, refs):
        np.testing.assert_allclose(np.asarray(got), np.asarray(exp),
                                   rtol=3e-2, atol=3e-3)
    print("KERNEL_OK")
</pallas_src>

<mosaic_0001>
module attributes {stable_mosaic.version = 11 : i64} {
  func.func @adaln_zero_kernel(%arg0: i32, %arg1: i32, %arg2: memref<8x64xf32, #tpu.memory_space<vmem>>, %arg3: memref<32x64xf32, #tpu.memory_space<vmem>>, %arg4: memref<1x8x32xf32, #tpu.memory_space<vmem>>) attributes {dimension_semantics = [#tpu.dimension_semantics<parallel>, #tpu.dimension_semantics<parallel>], iteration_bounds = array<i64: 6, 1>, scalar_prefetch = 0 : i64, scratch_operands = 0 : i64, tpu.core_type = #tpu.core_type<tc>, window_params = [{transform_indices = @transform_0, window_bounds = array<i64: 8, 64>}, {transform_indices = @transform_1, window_bounds = array<i64: 32, 64>}, {transform_indices = @transform_2, window_bounds = array<i64: 1, 8, 32>}]} {
    %c0 = arith.constant 0 : index
    %c0_0 = arith.constant 0 : index
    %0 = vector.load %arg2[%c0, %c0_0] : memref<8x64xf32, #tpu.memory_space<vmem>>, vector<8x64xf32>
    %c0_1 = arith.constant 0 : index
    %c0_2 = arith.constant 0 : index
    %1 = vector.load %arg3[%c0_1, %c0_2] : memref<32x64xf32, #tpu.memory_space<vmem>>, vector<32x64xf32>
    %cst = arith.constant dense<0.000000e+00> : vector<8x32xf32>
    %2 = tpu.matmul %0, %1, %cst {dimension_numbers = #tpu.dot_dimension_numbers<[1], [1], [0], [0], [0, 0, 1, 0], [], []>} : vector<8x64xf32>, vector<32x64xf32>, vector<8x32xf32> -> vector<8x32xf32>
    %3 = math.tanh %2 : vector<8x32xf32>
    %cst_3 = arith.constant 1.000000e+00 : f32
    %4 = vector.broadcast %cst_3 : f32 to vector<8x32xf32>
    %5 = arith.mulf %3, %4 : vector<8x32xf32>
    %c3_i32 = arith.constant 3 : i32
    %c0_i32 = arith.constant 0 : i32
    %6 = arith.cmpi eq, %c3_i32, %c0_i32 : i32
    %c1_i32 = arith.constant 1 : i32
    %7 = arith.select %6, %c1_i32, %c3_i32 : i32
    %8 = arith.remsi %arg0, %7 : i32
    %c0_i32_4 = arith.constant 0 : i32
    %9 = arith.cmpi ne, %8, %c0_i32_4 : i32
    %c0_i32_5 = arith.constant 0 : i32
    %10 = arith.cmpi slt, %8, %c0_i32_5 : i32
    %c0_i32_6 = arith.constant 0 : i32
    %11 = arith.cmpi slt, %7, %c0_i32_6 : i32
    %12 = arith.xori %10, %11 : i1
    %13 = arith.andi %12, %9 : i1
    %14 = arith.addi %8, %7 : i32
    %15 = arith.select %13, %14, %8 : i32
    %c0_i32_7 = arith.constant 0 : i32
    %16 = arith.cmpi ne, %15, %c0_i32_7 : i32
    %17 = arith.extui %16 : i1 to i32
    %18 = arith.sitofp %17 : i32 to f32
    %19 = vector.broadcast %18 : f32 to vector<8x32xf32>
    %20 = arith.addf %5, %19 : vector<8x32xf32>
    %c0_8 = arith.constant 0 : index
    %c0_9 = arith.constant 0 : index
    %c0_10 = arith.constant 0 : index
    %21 = vector.load %arg4[%c0_8, %c0_9, %c0_10] : memref<1x8x32xf32, #tpu.memory_space<vmem>>, vector<1x8x32xf32>
    %22 = vector.shape_cast %21 : vector<1x8x32xf32> to vector<8x32xf32>
    %23 = vector.shape_cast %20 : vector<8x32xf32> to vector<1x8x32xf32>
    tpu.vector_store %arg4[%c0_8, %c0_9, %c0_10], %23 {strides = array<i32>} : memref<1x8x32xf32, #tpu.memory_space<vmem>>, vector<1x8x32xf32>,
    return
  }
  func.func @transform_0(%arg0: i32, %arg1: i32) -> (i32, i32) {
    %c0_i32 = arith.constant 0 : i32
    %c0_i32_0 = arith.constant 0 : i32
    return %arg1, %c0_i32 : i32, i32
  }
  func.func @transform_1(%arg0: i32, %arg1: i32) -> (i32, i32) {
    %c0_i32 = arith.constant 0 : i32
    %c0_i32_0 = arith.constant 0 : i32
    return %arg0, %c0_i32 : i32, i32
  }
  func.func @transform_2(%arg0: i32, %arg1: i32) -> (i32, i32, i32) {
    %c0_i32 = arith.constant 0 : i32
    %c0_i32_0 = arith.constant 0 : i32
    return %arg0, %arg1, %c0_i32 : i32, i32, i32
  }
}

</mosaic_0001>

<llo_original>
// kernel: tpu_custom_call.1
$region0: #{tpu_custom_call.1}
  #allocation0 [shape = 'u32[]', space=smem, size = 0x4, offset = 0x4, fixed_abs, tag = 'smem constant byte address 0x4 - core index']
  #allocation1 [shape = 'u32[144,128]{1,0:T(1,128)}', space=vmem, size = 0x12000, scoped, tag = 'internal scratch']
  %s0 = inlined_call_operand.vmem [shape: f32[8,64], index: 0, kind: input, shape index: {}]
  %s1 = inlined_call_operand.vmem [shape: f32[192,64], index: 1, kind: input, shape index: {}]
  %s2 = inlined_call_operand.hbm [shape: f32[6,8,32], index: 2, kind: output, shape index: {}]
  %s3 = sld [smem:[#allocation0]]
  $region41: #{tpu_custom_call.1} parent=0
    _
  %s5 = ssub.s32 1, %s3
  %s6 = scalar_select 0, %s5, %s3
  $region1: #{tpu_custom_call.1} parent=0
    #allocation2 [shape = 'u8[8192]{0}', space=vmem, size = 0x2000, scoped, tag = 'output window, operand 0']
    #allocation3 [shape = 's32[2]{0}', space=sflag, size = 0x8, scoped, tag = 'scoped memory for tpu_custom_call.1']
    %7 = vsyncpa [#allocation3], 0
    %s8 = scalar_lea.sflag [#allocation3], 1
    %9 = vsyncpa %s8, 0
    loop: start=0, step=1, limit=8
    $region2: #{tpu_custom_call.1} parent=1 // loop_pre_header
      _
    $region3: #{tpu_custom_call.1} parent=1 // loop_header
      %s11 = sphi 0, %s15
      %p12 = scmp.ge.s32.totalorder %s11, 8
      %s18 = sphi 0, %s30
      %s19 = sphi 0, %s26
      %s20 = sphi 0, %s18
      %s21 = sphi 0, %s19
      %s22 = sphi 0, %s20
      %s23 = sphi 0, %s21
      %s33 = sphi 0, %s35
      %s36 = sphi 0, %s33
      %s37 = sphi 0, %s36
      %s53 = sphi 0, %s37
      %s59 = sphi 0, %s61
      %s62 = sphi 0, %s59
      %s63 = sphi 0, %s62
      %s79 = sphi 0, %s63
      %s87 = sphi 0, %s89
      %s90 = sphi 0, %s87
      %s91 = sphi 0, %s90
      %s107 = sphi 0, %s91
    $region4: #{tpu_custom_call.1} parent=1 // loop_header_branch
      %14 = sbr.rel (%p12) target = $region8
    $region5: #{tpu_custom_call.1} parent=1 // loop_body
      %s16 = ssub.s32 %s11, 1
      %s17 = ssub.s32 %s11, 2
      %s24 = sadd.s32 1, %s19
      %p25 = scmp.ge.s32.totalorder %s24, 1
      %s26 = scalar_select %p25, 0, %s24
      %s27 = sadd.s32 1, %s18
      %s28 = scalar_select %p25, %s27, %s18
      %p29 = scmp.ge.s32.totalorder %s28, 6
      %s30 = scalar_select %p29, 0, %s28
      %s31 = ssub.s32 %s19, %s26
      %p32 = scmp.eq.s32.totalorder %s31, 0
      %s34 = sadd.s32 %s33, 1
      %s35 = scalar_select %p32, %s33, %s34
      %p38 = pneg %p32
      %p39 = scmp.eq.s32.totalorder %s11, 5
      %p40 = por %p38, %p39
      %p41 = scmp.ne.s32.totalorder %s33, %s36
      %p42 = scmp.eq.s32.totalorder %s11, 0
      %p43 = por %p41, %p42
      %p44 = scmp.ne.s32.totalorder %s33, %s36
      %p45 = scmp.eq.s32.totalorder %s16, 5
      %p46 = por %p44, %p45
      %p47 = scmp.ne.s32.totalorder %s36, %s37
      %p48 = scmp.eq.s32.totalorder %s16, 0
      %p49 = por %p47, %p48
      %p50 = scmp.ne.s32.totalorder %s36, %s37
      %p51 = scmp.eq.s32.totalorder %s17, 5
      %p52 = por %p50, %p51
      %p54 = scmp.ne.s32.totalorder %s37, %s53
      %p55 = scmp.eq.s32.totalorder %s17, 0
      %p56 = por %p54, %p55
      %s57 = ssub.s32 %s18, %s30
      %p58 = scmp.eq.s32.totalorder %s57, 0
      %s60 = sadd.s32 %s59, 1
      %s61 = scalar_select %p58, %s59, %s60
      %p64 = pneg %p58
      %p65 = scmp.eq.s32.totalorder %s11, 5
      %p66 = por %p64, %p65
      %p67 = scmp.ne.s32.totalorder %s59, %s62
      %p68 = scmp.eq.s32.totalorder %s11, 0
      %p69 = por %p67, %p68
      %p70 = scmp.ne.s32.totalorder %s59, %s62
      %p71 = scmp.eq.s32.totalorder %s16, 5
      %p72 = por %p70, %p71
      %p73 = scmp.ne.s32.totalorder %s62, %s63
      %p74 = scmp.eq.s32.totalorder %s16, 0
      %p75 = por %p73, %p74
      %p76 = scmp.ne.s32.totalorder %s62, %s63
      %p77 = scmp.eq.s32.totalorder %s17, 5
      %p78 = por %p76, %p77
      %p80 = scmp.ne.s32.totalorder %s63, %s79
      %p81 = scmp.eq.s32.totalorder %s17, 0
      %p82 = por %p80, %p81
      %s83 = ssub.s32 %s18, %s30
      %s84 = ssub.s32 %s19, %s26
      %s85 = sor.u32 %s83, %s84
      %p86 = scmp.eq.s32.totalorder %s85, 0
      %s88 = sadd.s32 %s87, 1
      %s89 = scalar_select %p86, %s87, %s88
      %p92 = pneg %p86
      %p93 = scmp.eq.s32.totalorder %s11, 5
      %p94 = por %p92, %p93
      %p95 = scmp.ne.s32.totalorder %s87, %s90
      %p96 = scmp.eq.s32.totalorder %s11, 0
      %p97 = por %p95, %p96
      %p98 = scmp.ne.s32.totalorder %s87, %s90
      %p99 = scmp.eq.s32.totalorder %s16, 5
      %p100 = por %p98, %p99
      %p101 = scmp.ne.s32.totalorder %s90, %s91
      %p102 = scmp.eq.s32.totalorder %s16, 0
      %p103 = por %p101, %p102
      %p104 = scmp.ne.s32.totalorder %s90, %s91
      %p105 = scmp.eq.s32.totalorder %s17, 5
      %p106 = por %p104, %p105
      %p108 = scmp.ne.s32.totalorder %s91, %s107
      %p109 = scmp.eq.s32.totalorder %s17, 0
      %p110 = por %p108, %p109
      %p111 = scmp.le.s32.totalorder 1, %s11
      %p112 = scmp.lt.s32.totalorder %s11, 7
      %p113 = pnand %p111, %p112
      %p114 = pneg %p113
      // Predicated region
      $region9: #{tpu_custom_call.1} parent=5 // pred_check
        _
      $region10: #{tpu_custom_call.1} parent=5 // pred_check_branch
        %116 = sbr.rel (%p113) target = $region12
      $region11: #{tpu_custom_call.1} parent=5 // pred_region
        %s117 = ssub.s32 %s11, 1
        // Predicated region
        $region13: #{tpu_custom_call.1} parent=11 // pred_check
          %p118 = pneg %p49
        $region14: #{tpu_custom_call.1} parent=11 // pred_check_branch
          %120 = sbr.rel (%p118) target = $region16
        $region15: #{tpu_custom_call.1} parent=11 // pred_region
          %p121 = scmp.lt.s32.totalorder %s21, 0
          %s122 = scalar_select %p121, %s21, 0
          %s123 = smul.addr %s122, 8
          %s124 = scalar_lea.vmem %s0, %s123
        $region16: #{tpu_custom_call.1} parent=11 // pred_fallthru
          _
      $region12: #{tpu_custom_call.1} parent=5 // pred_fallthru
        _
      %p125 = scmp.lt.s32.totalorder %s11, 6
      // Predicated region
      $region17: #{tpu_custom_call.1} parent=5 // pred_check
        %p126 = pneg %p125
      $region18: #{tpu_custom_call.1} parent=5 // pred_check_branch
        %128 = sbr.rel (%p126) target = $region20
      $region19: #{tpu_custom_call.1} parent=5 // pred_region
        // Predicated region
        $region21: #{tpu_custom_call.1} parent=19 // pred_check
          %p129 = pneg %p69
        $region22: #{tpu_custom_call.1} parent=19 // pred_check_branch
          %131 = sbr.rel (%p129) target = $region24
        $region23: #{tpu_custom_call.1} parent=19 // pred_region
          %s132 = smul.u32 4, %s18
          %p133 = scmp.lt.s32.totalorder %s132, 23
          %s134 = scalar_select %p133, %s132, 23
          %s135 = smul.addr %s134, 8
          %s136 = scalar_lea.vmem %s1, %s135
          %s137 = smul.u32 4, %s18
        $region24: #{tpu_custom_call.1} parent=19 // pred_fallthru
          _
      $region20: #{tpu_custom_call.1} parent=5 // pred_fallthru
        _
      %p138 = scmp.le.s32.totalorder 1, %s11
      %p139 = scmp.lt.s32.totalorder %s11, 7
      %p140 = pnand %p138, %p139
      %p141 = pneg %p140
      // Predicated region
      $region25: #{tpu_custom_call.1} parent=5 // pred_check
        _
      $region26: #{tpu_custom_call.1} parent=5 // pred_check_branch
        %143 = sbr.rel (%p140) target = $region28
      $region27: #{tpu_custom_call.1} parent=5 // pred_region
        %s144 = ssub.s32 %s11, 1
        %p145 = scmp.lt.s32.totalorder %s21, 0
        %s146 = scalar_select %p145, %s21, 0
        %s147 = smul.addr %s146, 8
        %s148 = scalar_lea.vmem %s0, %s147
        %p149 = pneg %p49
        %p150 = pneg %p46
        %s151 = smul.u32 4, %s20
        %p152 = scmp.lt.s32.totalorder %s151, 23
        %s153 = scalar_select %p152, %s151, 23
        %s154 = smul.addr %s153, 8
        %s155 = scalar_lea.vmem %s1, %s154
        %p156 = pneg %p75
        %p157 = pneg %p72
        %p158 = pneg %p103
        %p159 = pneg %p100
        %s160 = sand.u32 %s90, 1
        %s161 = scalar_lea.sflag [#allocation3], %s160
        %s162 = sand.u32 %s90, 1
        %s163 = smul.addr %s162, 8
        %s164 = scalar_lea.vmem [#allocation2], %s163
        %p165 = scmp.lt.s32.totalorder %s21, 0
        %s166 = scalar_select %p165, %s21, 0
        %s167 = smul.addr %s166, 8
        %s168 = scalar_lea.vmem %s0, %s167
        %s169 = smul.u32 4, %s20
        %p170 = scmp.lt.s32.totalorder %s169, 23
        %s171 = scalar_select %p170, %s169, 23
        %s172 = smul.addr %s171, 8
        %s173 = scalar_lea.vmem %s1, %s172
        %s174 = smul.u32 4, %s20
        %v175 = vld [vmem:[%s168] sm:$0xff]
        %v176 = vld [vmem:[%s173] sm:$0xff]
        %v177 = vld [vmem:[%s173 + $0x8] sm:$0xff]
        %v178 = vld [vmem:[%s173 + $0x10] sm:$0xff]
        %v179 = vld [vmem:[%s173 + $0x18] sm:$0xff]
        %vm180 = vcmask 523264
        %v182 = vsel %vm180, %v175, 0
        %v185 = vsel %vm180, %v176, 0
        %v188 = vsel %vm180, %v177, 0
        %v191 = vsel %vm180, %v178, 0
        %v194 = vsel %vm180, %v179, 0
        %196 = vmatprep.subr.mxu0 0.0
        %197 = vmatpush1.xpose.msra.mxu0 %v185
        %198 = vmatprep.subr.mxu0 0.0
        %199 = vmatpush1.xpose.msra.mxu0 %v188
        %200 = vmatprep.subr.mxu0 0.0
        %201 = vmatpush1.xpose.msra.mxu0 %v191
        %202 = vmatprep.subr.mxu0 0.0
        %203 = vmatpush1.xpose.msra.mxu0 %v194
        %204 = vmatprep.subr.mxu0 0.0
        %205 = vmatpush1.xpose.msra.mxu0 0.0
        %206 = vmatprep.subr.mxu0 0.0
        %207 = vmatpush1.xpose.msra.mxu0 0.0
        %208 = vmatprep.subr.mxu0 0.0
        %209 = vmatpush1.xpose.msra.mxu0 0.0
        %210 = vmatprep.subr.mxu0 0.0
        %211 = vmatpush1.xpose.msra.mxu0 0.0
        %212 = vmatprep.subr.mxu0 0.0
        %213 = vmatpush1.xpose.msra.mxu0 0.0
        %214 = vmatprep.subr.mxu0 0.0
        %215 = vmatpush1.xpose.msra.mxu0 0.0
        %216 = vmatprep.subr.mxu0 0.0
        %217 = vmatpush1.xpose.msra.mxu0 0.0
        %218 = vmatprep.subr.mxu0 0.0
        %219 = vmatpush1.xpose.msra.mxu0 0.0
        %220 = vmatprep.subr.mxu0 0.0
        %221 = vmatpush1.xpose.msra.mxu0 0.0
        %222 = vmatprep.subr.mxu0 0.0
        %223 = vmatpush1.xpose.msra.mxu0 0.0
        %224 = vmatprep.subr.mxu0 0.0
        %225 = vmatpush1.xpose.msra.mxu0 0.0
        %226 = vmatprep.subr.mxu0 0.0
        %227 = vmatpush1.xpose.msra.mxu0 0.0
        %228 = vmatprep.subr.mxu0 0.0
        %229 = vmatpush1.xpose.msra.mxu0 0.0
        %230 = vmatprep.subr.mxu0 0.0
        %231 = vmatpush1.xpose.msra.mxu0 0.0
        %232 = vmatprep.subr.mxu0 0.0
        %233 = vmatpush1.xpose.msra.mxu0 0.0
        %234 = vmatprep.subr.mxu0 0.0
        %235 = vmatpush1.xpose.msra.mxu0 0.0
        %236 = vmatprep.subr.mxu0 0.0
        %237 = vmatpush1.xpose.msra.mxu0 0.0
        %238 = vmatprep.subr.mxu0 0.0
        %239 = vmatpush1.xpose.msra.mxu0 0.0
        %240 = vmatprep.subr.mxu0 0.0
        %241 = vmatpush1.xpose.msra.mxu0 0.0
        %242 = vmatprep.subr.mxu0 0.0
        %243 = vmatpush1.xpose.msra.mxu0 0.0
        %244 = vmatprep.subr.mxu0 0.0
        %245 = vmatpush1.xpose.msra.mxu0 0.0
        %246 = vmatprep.subr.mxu0 0.0
        %247 = vmatpush1.xpose.msra.mxu0 0.0
        %248 = vmatprep.subr.mxu0 0.0
        %249 = vmatpush1.xpose.msra.mxu0 0.0
        %250 = vmatprep.subr.mxu0 0.0
        %251 = vmatpush1.xpose.msra.mxu0 0.0
        %252 = vmatprep.subr.mxu0 0.0
        %253 = vmatpush1.xpose.msra.mxu0 0.0
        %254 = vmatprep.subr.mxu0 0.0
        %255 = vmatpush1.xpose.msra.mxu0 0.0
        %256 = vmatprep.subr.mxu0 0.0
        %257 = vmatpush1.xpose.msra.mxu0 0.0
        %258 = vmatprep.subr.mxu0 0.0
        %259 = vmatpush1.xpose.msra.mxu0 0.0
        %260 = vmatprep.mubr.f32.mxu0 0.0
        %261 = vmatmul.mubr.f32.gmra.mrb[0].mxu0 %v182
        %v262 = vpop.f32.mrb[0].mxu0
        %v263 = vadd.f32 0.0, %v262
        %v264 = vpop.f32.mrb[0].mxu0
        %265 = vdwg.mxu0
        %v266 = vtanh.pop %v263
        %p267 = scmp.lt.s32.totalorder %s20, 0
        %s268 = ssub.s32 0, %s20
        %s269 = scalar_select %p267, %s268, %s20
        %s270 = sdiv.u32.pop %s269, 3
        %s271 = srem.u32.pop %s269, 3
        %s272 = ssub.s32 0, %s271
        %s273 = scalar_select %p267, %s272, %s271
        %p274 = scmp.ne.s32.totalorder %s273, 0
        %p275 = scmp.lt.s32.totalorder %s273, 0
        %p276 = pnand %p275, %p274
        %p277 = pneg %p276
        %s278 = sadd.s32 %s273, 3
        %s279 = scalar_select %p277, %s278, %s273
        %p280 = scmp.ne.s32.totalorder %s279, 0
        %s281 = scalar_select %p280, 1, 0
        %s282 = scvt.s32.f32 %s281
        %v283 = vstv %s282
        %v284 = vadd.f32 %v266, %v283
        %vm285 = vcmask 261120
        %286 = vst.msk [vmem:[%s164] sm:$0xff] %vm285, %v284
        %s287 = sand.u32 %s90, 1
        %s288 = scalar_lea.sflag [#allocation3], %s287
        %s289 = sand.u32 %s90, 1
        %s290 = smul.addr %s289, 8
        %s291 = scalar_lea.vmem [#allocation2], %s290
        // Predicated region
        $region29: #{tpu_custom_call.1} parent=27 // pred_check
          %p292 = pneg %p100
        $region30: #{tpu_custom_call.1} parent=27 // pred_check_branch
          %294 = sbr.rel (%p292) target = $region32
        $region31: #{tpu_custom_call.1} parent=27 // pred_region
          %s296 = ssub.s32 128, 128
          %297 = vsyncadd %s288, %s296
          %s298 = sadd.s32 %s21, %s20
          %s299 = smul.addr %s298, 128
          %s300 = scalar_lea.hbm %s2, %s299
          %s302 = sshll.u32 %s291, 4
          %s303 = int_to_ptr.vmem [resolvable:$true] %s302
          %305 = dma.vmem_to_hbm [thread:$0]  %s303, 128, %s300, %s288
        $region32: #{tpu_custom_call.1} parent=27 // pred_fallthru
          _
      $region28: #{tpu_custom_call.1} parent=5 // pred_fallthru
        _
      %p306 = scmp.le.s32.totalorder 2, %s11
      // Predicated region
      $region33: #{tpu_custom_call.1} parent=5 // pred_check
        %p307 = pneg %p306
      $region34: #{tpu_custom_call.1} parent=5 // pred_check_branch
        %309 = sbr.rel (%p307) target = $region36
      $region35: #{tpu_custom_call.1} parent=5 // pred_region
        %s310 = ssub.s32 %s11, 2
        // Predicated region
        $region37: #{tpu_custom_call.1} parent=35 // pred_check
          %p311 = pneg %p106
        $region38: #{tpu_custom_call.1} parent=35 // pred_check_branch
          %313 = sbr.rel (%p311) target = $region40
        $region39: #{tpu_custom_call.1} parent=35 // pred_region
          %s314 = sand.u32 %s91, 1
          %s315 = scalar_lea.sflag [#allocation3], %s314
          %s316 = sand.u32 %s91, 1
          %s317 = smul.addr %s316, 8
          %s318 = scalar_lea.vmem [#allocation2], %s317
          %319 = dma.done %s315, 128
        $region40: #{tpu_custom_call.1} parent=35 // pred_fallthru
          _
      $region36: #{tpu_custom_call.1} parent=5 // pred_fallthru
        _
    $region6: #{tpu_custom_call.1} parent=1 // loop_footer
      %s15 = sadd.s32 1, %s11
    $region7: #{tpu_custom_call.1} parent=1 // loop_footer_branch
      %10 = sbr.rel target = $region3
    $region8: #{tpu_custom_call.1} parent=1 // loop_exit
      _
    %320 = vsyncpa [#allocation3], 1
    %s321 = scalar_lea.sflag [#allocation3], 1
    %322 = vsyncpa %s321, 1

</llo_original>
